<compile_context>
chip_gen: v7x
topology: tpu7x:2x2x1
jax: 0.10.0
libtpu: 0.0.40
codegen_flags: <defaults>
</compile_context>

<pallas_src>
import math

import jax
import jax.numpy as jnp
from jax.experimental import pallas as pl
from jax.experimental.pallas import tpu as pltpu


# ----------------------------------------------------------------------------
# Pallas kernel: one (Tp, 2K') @ (2K', lane) matmul per batch tile.
# ----------------------------------------------------------------------------
def _prodmp_kernel(basis_ref, w_ref, out_ref):
    # basis_ref : (Tp, 2K')    [pos_basis_adj | y1 | y2 | dt*vel_basis_adj | dt*dy1 | dt*dy2]
    # w_ref     : (2K', lane)  block-diagonal augmented weights, lane = Bb*2D
    # out_ref   : (Tp, lane)   per-batch [pos..., dt*vel...] trajectories, lane-dense
    out_ref[...] = jnp.dot(
        basis_ref[...], w_ref[...], preferred_element_type=jnp.float32
    ).astype(out_ref.dtype)


# ----------------------------------------------------------------------------
# Wrapper: ProDMPPredictor (learn_tau=False)
# ----------------------------------------------------------------------------
class ProDMPPredictorPallas:
    def __init__(self, num_dof, dt=0.02, num_basis=8, alpha=25.0,
                 target_lane=8192, out_dtype=jnp.float32):
        self.num_dof = num_dof
        self.dt = float(dt)
        self.num_basis = num_basis
        self.num_basis_g = num_basis + 1          # basis weights + goal
        self.learn_tau = False
        self.out_dtype = out_dtype

        # ---- deterministic precomputed basis (plain-JAX "parameter setup") ----
        n_steps = int(round(1.0 / self.dt))       # robust T (avoids float-arange off-by-one)
        times = jnp.arange(n_steps, dtype=jnp.float32) * self.dt
        self.T = n_steps
        c = alpha / 2.0
        e = jnp.exp(-c * times)
        y1, y2 = e, times * e                                        # homogeneous solutions
        dy1, dy2 = -c * e, (1.0 - c * times) * e

        centers = jnp.linspace(0.0, 1.0, num_basis, dtype=jnp.float32)
        h = 1.0 / num_basis
        rbf = jnp.exp(-((times[:, None] - centers[None, :]) ** 2) / (2.0 * h * h))
        rbf = rbf / (jnp.sum(rbf, axis=-1, keepdims=True) + 1e-8)
        goal = times[:, None]
        pos_basis = jnp.concatenate([rbf * times[:, None], goal], axis=-1)   # (T, K)
        vel_basis = jnp.gradient(pos_basis, self.dt, axis=0)                 # (T, K)

        # initial-condition constants at t = 0 (init_time is always zeros in forward)
        self.y1_0 = float(y1[0]); self.y2_0 = float(y2[0])
        self.dy1_0 = float(dy1[0]); self.dy2_0 = float(dy2[0])
        det = self.y1_0 * self.dy2_0 - self.y2_0 * self.dy1_0
        self.inv_det = 1.0 / det
        self.inv_dt = 1.0 / self.dt
        xi3 = (self.dy2_0 * pos_basis[0] - self.y2_0 * vel_basis[0]) * self.inv_det   # (K,)
        xi4 = (self.y1_0 * vel_basis[0] - self.dy1_0 * pos_basis[0]) * self.inv_det   # (K,)

        # adjusted bases: zero contribution (pos & vel) at the initial time
        pos_basis_adj = pos_basis - y1[:, None] * xi3 - y2[:, None] * xi4
        vel_basis_adj = vel_basis - dy1[:, None] * xi3 - dy2[:, None] * xi4

        # fold xi1/xi2 into the matmul (augment with homogeneous columns) -> K' = K+2,
        # and fold dt directly into the velocity half of the basis.
        pos_aug = jnp.concatenate([pos_basis_adj, y1[:, None], y2[:, None]], axis=-1)
        vel_aug = self.dt * jnp.concatenate(
            [vel_basis_adj, dy1[:, None], dy2[:, None]], axis=-1)
        self.Kp = self.num_basis_g + 2            # K'
        self.K2 = 2 * self.Kp                     # block-diagonal contraction dim

        # pad time axis to a multiple of 8 sublanes; single merged LHS (Tp, 2K')
        self.Tp = ((self.T + 7) // 8) * 8
        pad_t = self.Tp - self.T
        basis = jnp.concatenate([pos_aug, vel_aug], axis=-1)        # (T, 2K')
        self.basis = jnp.pad(basis, ((0, pad_t), (0, 0)))           # (Tp, 2K')

        # kept for the pure-JAX reference
        self._pos_basis_adj = pos_basis_adj
        self._vel_basis_adj = vel_basis_adj
        self._y = jnp.stack([y1, y2], axis=-1)       # (T, 2)
        self._dy = jnp.stack([dy1, dy2], axis=-1)    # (T, 2)

        # lane tiling: each batch element owns 2*D lanes (pos + vel interleaved);
        # Bb_min makes one tile exactly a multiple of 128 lanes.
        self.two_d = 2 * num_dof
        self.Bb_min = max(1, 128 // math.gcd(self.two_d, 128))
        self.target_lane = int(target_lane)

    @property
    def output_size(self):
        return self.num_dof * self.num_basis + self.num_dof + int(self.learn_tau)

    def __call__(self, pos, vel, basis_weights, return_lane_major=False):
        B = pos.shape[0]
        D, K, Kp, K2 = self.num_dof, self.num_basis_g, self.Kp, self.K2
        T, Tp = self.T, self.Tp
        two_d = self.two_d

        pos = pos.astype(jnp.float32)
        vel = vel.astype(jnp.float32)
        w = basis_weights.reshape(B, D, K).astype(jnp.float32)

        # ---- tiny per-batch setup in XLA: initial-condition coefficients ----
        init_vel = vel * self.inv_dt
        xi1 = (self.dy2_0 * pos - self.y2_0 * init_vel) * self.inv_det     # (B, D)
        xi2 = (self.y1_0 * init_vel - self.dy1_0 * pos) * self.inv_det     # (B, D)

        # augmented, pre-transposed weights: (B, K', D)
        w_aug = jnp.concatenate(
            [jnp.transpose(w, (0, 2, 1)), xi1[:, None, :], xi2[:, None, :]], axis=1)

        # ---- batch tiling: wide lane tiles, but shrink the pad for small B ----
        Bb_min = self.Bb_min
        B_aligned = ((B + Bb_min - 1) // Bb_min) * Bb_min
        target_Bb = max(Bb_min, (self.target_lane // (Bb_min * two_d)) * Bb_min)
        Bb = min(target_Bb, B_aligned)
        nb = pl.cdiv(B_aligned, Bb)
        B_pad = nb * Bb
        lane = Bb * two_d

        w_aug = jnp.pad(w_aug, ((0, B_pad - B), (0, 0), (0, 0)))           # (B_pad, K', D)

        # block-diagonal RHS: top K' rows feed the pos columns, bottom K' rows feed
        # the (dt-scaled) vel columns; per-batch column order = [pos_0..pos_{D-1},
        # vel_0..vel_{D-1}] so the output already matches concat(pos, vel*dt).
        zeros = jnp.zeros_like(w_aug)
        top = jnp.concatenate([w_aug, zeros], axis=-1)                     # (B_pad, K', 2D)
        bot = jnp.concatenate([zeros, w_aug], axis=-1)                     # (B_pad, K', 2D)
        w_big = jnp.concatenate([top, bot], axis=1)                        # (B_pad, 2K', 2D)
        w_flat = jnp.transpose(w_big, (1, 0, 2)).reshape(K2, B_pad * two_d)

        out_flat = pl.pallas_call(
            _prodmp_kernel,
            out_shape=jax.ShapeDtypeStruct((Tp, B_pad * two_d), self.out_dtype),
            grid=(nb,),
            in_specs=[
                # constant basis: same block index every step -> DMA'd once
                pl.BlockSpec((Tp, K2), lambda i: (0, 0)),
                # per-tile block-diagonal weights
                pl.BlockSpec((K2, lane), lambda i: (0, i)),
            ],
            out_specs=pl.BlockSpec((Tp, lane), lambda i: (0, i)),
            compiler_params=pltpu.CompilerParams(
                dimension_semantics=("parallel",)),
        )(self.basis, w_flat)

        if return_lane_major:
            # (Tp, B_pad*2D) lane-major layout, for consumers that can use it directly
            return out_flat

        # epilogue: one reshape + transpose + slice (no concat) back to [B, T, 2D]
        out = jnp.transpose(out_flat.reshape(Tp, B_pad, two_d), (1, 0, 2))
        return out[:B, :T]

    # pure-JAX reference for verification
    def reference(self, pos, vel, basis_weights):
        B = pos.shape[0]
        D, K = self.num_dof, self.num_basis_g
        w = basis_weights.reshape(B, D, K).astype(jnp.float32)
        init_pos = pos.astype(jnp.float32)
        init_vel = vel.astype(jnp.float32) * self.inv_dt
        xi1 = (self.dy2_0 * init_pos - self.y2_0 * init_vel) * self.inv_det
        xi2 = (self.y1_0 * init_vel - self.dy1_0 * init_pos) * self.inv_det
        y1, y2 = self._y[:, 0], self._y[:, 1]
        dy1, dy2 = self._dy[:, 0], self._dy[:, 1]
        pos_t = (y1[None, :, None] * xi1[:, None, :] + y2[None, :, None] * xi2[:, None, :]
                 + jnp.einsum('tk,bdk->btd', self._pos_basis_adj, w))
        vel_t = (dy1[None, :, None] * xi1[:, None, :] + dy2[None, :, None] * xi2[:, None, :]
                 + jnp.einsum('tk,bdk->btd', self._vel_basis_adj, w)) * self.dt
        return jnp.concatenate([pos_t, vel_t], axis=-1)


if __name__ == "__main__":
    num_dof = 2
    model = ProDMPPredictorPallas(num_dof=num_dof, dt=0.02, num_basis=8)

    B = 4
    key = jax.random.PRNGKey(0)
    k1, k2, k3 = jax.random.split(key, 3)
    pos = jax.random.normal(k1, (B, num_dof), dtype=jnp.float32)
    vel = 0.1 * jax.random.normal(k2, (B, num_dof), dtype=jnp.float32)
    basis_weights = jax.random.normal(k3, (B, model.output_size), dtype=jnp.float32)

    out = jax.block_until_ready(model(pos, vel, basis_weights))

    ref = model.reference(pos, vel, basis_weights)
    assert out.shape == (B, model.T, 2 * num_dof), out.shape
    max_err = float(jnp.max(jnp.abs(out - ref)))
    assert jnp.allclose(out, ref, atol=1e-3, rtol=1e-3), max_err

    print("KERNEL_OK")
</pallas_src>

<mosaic_0001>
module attributes {stable_mosaic.version = 11 : i64} {
  func.func @_prodmp_kernel(%arg0: i32, %arg1: memref<56x22xf32, #tpu.memory_space<vmem>>, %arg2: memref<22x128xf32, #tpu.memory_space<vmem>>, %arg3: memref<56x128xf32, #tpu.memory_space<vmem>>) attributes {dimension_semantics = [#tpu.dimension_semantics<parallel>], iteration_bounds = array<i64: 1>, scalar_prefetch = 0 : i64, scratch_operands = 0 : i64, tpu.core_type = #tpu.core_type<tc>, window_params = [{pipeline_mode = #tpu.pipeline_mode<synchronous>, transform_indices = @transform_0, window_bounds = array<i64: 56, 22>}, {transform_indices = @transform_1, window_bounds = array<i64: 22, 128>}, {transform_indices = @transform_2, window_bounds = array<i64: 56, 128>}]} {
    %c0 = arith.constant 0 : index
    %c0_0 = arith.constant 0 : index
    %0 = vector.load %arg1[%c0, %c0_0] : memref<56x22xf32, #tpu.memory_space<vmem>>, vector<56x22xf32>
    %c0_1 = arith.constant 0 : index
    %c0_2 = arith.constant 0 : index
    %1 = vector.load %arg2[%c0_1, %c0_2] : memref<22x128xf32, #tpu.memory_space<vmem>>, vector<22x128xf32>
    %cst = arith.constant dense<0.000000e+00> : vector<56x128xf32>
    %2 = tpu.matmul %0, %1, %cst {dimension_numbers = #tpu.dot_dimension_numbers<[1], [0], [0], [1], [0, 0, 1, 1], [], []>} : vector<56x22xf32>, vector<22x128xf32>, vector<56x128xf32> -> vector<56x128xf32>
    %c0_3 = arith.constant 0 : index
    %c0_4 = arith.constant 0 : index
    %3 = vector.load %arg3[%c0_3, %c0_4] : memref<56x128xf32, #tpu.memory_space<vmem>>, vector<56x128xf32>
    tpu.vector_store %arg3[%c0_3, %c0_4], %2 {strides = array<i32>} : memref<56x128xf32, #tpu.memory_space<vmem>>, vector<56x128xf32>,
    return
  }
  func.func @transform_0(%arg0: i32) -> (i32, i32) {
    %c0_i32 = arith.constant 0 : i32
    %c0_i32_0 = arith.constant 0 : i32
    %c0_i32_1 = arith.constant 0 : i32
    return %c0_i32, %c0_i32_0 : i32, i32
  }
  func.func @transform_1(%arg0: i32) -> (i32, i32) {
    %c0_i32 = arith.constant 0 : i32
    %c0_i32_0 = arith.constant 0 : i32
    return %c0_i32, %arg0 : i32, i32
  }
  func.func @transform_2(%arg0: i32) -> (i32, i32) {
    %c0_i32 = arith.constant 0 : i32
    %c0_i32_0 = arith.constant 0 : i32
    return %c0_i32, %arg0 : i32, i32
  }
}

</mosaic_0001>

<llo_original>
// kernel: tpu_custom_call.1
$region0: #{tpu_custom_call.1}
  #allocation0 [shape = 'u32[]', space=smem, size = 0x4, offset = 0x4, fixed_abs, tag = 'smem constant byte address 0x4 - core index']
  #allocation1 [shape = 'u32[144,128]{1,0:T(1,128)}', space=vmem, size = 0x12000, scoped, tag = 'internal scratch']
  %s0 = inlined_call_operand.vmem [shape: f32[56,22], index: 0, kind: input, shape index: {}]
  %s1 = inlined_call_operand.vmem [shape: f32[22,128], index: 1, kind: input, shape index: {}]
  %s2 = inlined_call_operand.hbm [shape: f32[56,128], index: 2, kind: output, shape index: {}]
  %s3 = sld [smem:[#allocation0]]
  $region18: #{tpu_custom_call.1} parent=0
    _
  %s5 = ssub.s32 1, %s3
  %s6 = scalar_select 0, %s5, %s3
  $region1: #{tpu_custom_call.1} parent=0
    #allocation2 [shape = 'u8[28672]{0}', space=vmem, size = 0x7000, scoped, tag = 'output window, operand 0, single buffered']
    #allocation3 [shape = 's32[1]{0}', space=sflag, size = 0x4, scoped, tag = 'scoped memory for tpu_custom_call.1']
    %7 = vsyncpa [#allocation3], 0
    // Predicated region
    $region2: #{tpu_custom_call.1} parent=1 // pred_check
      _
    $region3: #{tpu_custom_call.1} parent=1 // pred_check_branch
      %9 = sbr.rel (0) target = $region5
    $region4: #{tpu_custom_call.1} parent=1 // pred_region
      _
    $region5: #{tpu_custom_call.1} parent=1 // pred_fallthru
      _
    // Predicated region
    $region6: #{tpu_custom_call.1} parent=1 // pred_check
      _
    $region7: #{tpu_custom_call.1} parent=1 // pred_check_branch
      %11 = sbr.rel (0) target = $region9
    $region8: #{tpu_custom_call.1} parent=1 // pred_region
      _
    $region9: #{tpu_custom_call.1} parent=1 // pred_fallthru
      _
    %v12 = vld [vmem:[%s0] sm:$0xff]
    %v13 = vld [vmem:[%s0 + $0x8] sm:$0xff]
    %v14 = vld [vmem:[%s0 + $0x10] sm:$0xff]
    %v15 = vld [vmem:[%s0 + $0x18] sm:$0xff]
    %v16 = vld [vmem:[%s0 + $0x20] sm:$0xff]
    %v17 = vld [vmem:[%s0 + $0x28] sm:$0xff]
    %v18 = vld [vmem:[%s0 + $0x30] sm:$0xff]
    %v19 = vld [vmem:[%s1] sm:$0xff]
    %v20 = vld [vmem:[%s1 + $0x8] sm:$0xff]
    %v21 = vld [vmem:[%s1 + $0x10] sm:$0x3f]
    %vm22 = vcmask 179200
    %v24 = vsel %vm22, %v12, 0
    %v27 = vsel %vm22, %v13, 0
    %v30 = vsel %vm22, %v14, 0
    %v33 = vsel %vm22, %v15, 0
    %v36 = vsel %vm22, %v16, 0
    %v39 = vsel %vm22, %v17, 0
    %v42 = vsel %vm22, %v18, 0
    %vm44 = vcmask 1045504
    %v46 = vsel %vm44, %v21, 0
    %48 = vmatprep.subr.mxu0 0.0
    %49 = vmatpush1.msra.mxu0 %v19
    %50 = vmatprep.subr.mxu0 0.0
    %51 = vmatpush1.msra.mxu0 %v20
    %52 = vmatprep.subr.mxu0 0.0
    %53 = vmatpush1.msra.mxu0 %v46
    %54 = vmatprep.subr.mxu0 0.0
    %55 = vmatpush1.msra.mxu0 0.0
    %56 = vmatprep.subr.mxu0 0.0
    %57 = vmatpush1.msra.mxu0 0.0
    %58 = vmatprep.subr.mxu0 0.0
    %59 = vmatpush1.msra.mxu0 0.0
    %60 = vmatprep.subr.mxu0 0.0
    %61 = vmatpush1.msra.mxu0 0.0
    %62 = vmatprep.subr.mxu0 0.0
    %63 = vmatpush1.msra.mxu0 0.0
    %64 = vmatprep.subr.mxu0 0.0
    %65 = vmatpush1.msra.mxu0 0.0
    %66 = vmatprep.subr.mxu0 0.0
    %67 = vmatpush1.msra.mxu0 0.0
    %68 = vmatprep.subr.mxu0 0.0
    %69 = vmatpush1.msra.mxu0 0.0
    %70 = vmatprep.subr.mxu0 0.0
    %71 = vmatpush1.msra.mxu0 0.0
    %72 = vmatprep.subr.mxu0 0.0
    %73 = vmatpush1.msra.mxu0 0.0
    %74 = vmatprep.subr.mxu0 0.0
    %75 = vmatpush1.msra.mxu0 0.0
    %76 = vmatprep.subr.mxu0 0.0
    %77 = vmatpush1.msra.mxu0 0.0
    %78 = vmatprep.subr.mxu0 0.0
    %79 = vmatpush1.msra.mxu0 0.0
    %80 = vmatprep.subr.mxu0 0.0
    %81 = vmatpush1.msra.mxu0 0.0
    %82 = vmatprep.subr.mxu0 0.0
    %83 = vmatpush1.msra.mxu0 0.0
    %84 = vmatprep.subr.mxu0 0.0
    %85 = vmatpush1.msra.mxu0 0.0
    %86 = vmatprep.subr.mxu0 0.0
    %87 = vmatpush1.msra.mxu0 0.0
    %88 = vmatprep.subr.mxu0 0.0
    %89 = vmatpush1.msra.mxu0 0.0
    %90 = vmatprep.subr.mxu0 0.0
    %91 = vmatpush1.msra.mxu0 0.0
    %92 = vmatprep.subr.mxu0 0.0
    %93 = vmatpush1.msra.mxu0 0.0
    %94 = vmatprep.subr.mxu0 0.0
    %95 = vmatpush1.msra.mxu0 0.0
    %96 = vmatprep.subr.mxu0 0.0
    %97 = vmatpush1.msra.mxu0 0.0
    %98 = vmatprep.subr.mxu0 0.0
    %99 = vmatpush1.msra.mxu0 0.0
    %100 = vmatprep.subr.mxu0 0.0
    %101 = vmatpush1.msra.mxu0 0.0
    %102 = vmatprep.subr.mxu0 0.0
    %103 = vmatpush1.msra.mxu0 0.0
    %104 = vmatprep.subr.mxu0 0.0
    %105 = vmatpush1.msra.mxu0 0.0
    %106 = vmatprep.subr.mxu0 0.0
    %107 = vmatpush1.msra.mxu0 0.0
    %108 = vmatprep.subr.mxu0 0.0
    %109 = vmatpush1.msra.mxu0 0.0
    %110 = vmatprep.subr.mxu0 0.0
    %111 = vmatpush1.msra.mxu0 0.0
    %112 = vmatprep.mubr.f32.mxu0 0.0
    %113 = vmatmul.mubr.f32.gmra.mrb[0].mxu0 %v24
    %v114 = vpop.f32.mrb[0].mxu0
    %v115 = vadd.f32 0.0, %v114
    %v116 = vpop.f32.mrb[0].mxu0
    %117 = vmatprep.mubr.f32.mxu0 0.0
    %118 = vmatmul.mubr.f32.gmra.mrb[0].mxu0 %v27
    %v119 = vpop.f32.mrb[0].mxu0
    %v120 = vadd.f32 0.0, %v119
    %v121 = vpop.f32.mrb[0].mxu0
    %122 = vmatprep.mubr.f32.mxu0 0.0
    %123 = vmatmul.mubr.f32.gmra.mrb[0].mxu0 %v30
    %v124 = vpop.f32.mrb[0].mxu0
    %v125 = vadd.f32 0.0, %v124
    %v126 = vpop.f32.mrb[0].mxu0
    %127 = vmatprep.mubr.f32.mxu0 0.0
    %128 = vmatmul.mubr.f32.gmra.mrb[0].mxu0 %v33
    %v129 = vpop.f32.mrb[0].mxu0
    %v130 = vadd.f32 0.0, %v129
    %v131 = vpop.f32.mrb[0].mxu0
    %132 = vmatprep.mubr.f32.mxu0 0.0
    %133 = vmatmul.mubr.f32.gmra.mrb[0].mxu0 %v36
    %v134 = vpop.f32.mrb[0].mxu0
    %v135 = vadd.f32 0.0, %v134
    %v136 = vpop.f32.mrb[0].mxu0
    %137 = vmatprep.mubr.f32.mxu0 0.0
    %138 = vmatmul.mubr.f32.gmra.mrb[0].mxu0 %v39
    %v139 = vpop.f32.mrb[0].mxu0
    %v140 = vadd.f32 0.0, %v139
    %v141 = vpop.f32.mrb[0].mxu0
    %142 = vmatprep.mubr.f32.mxu0 0.0
    %143 = vmatmul.mubr.f32.gmra.mrb[0].mxu0 %v42
    %v144 = vpop.f32.mrb[0].mxu0
    %v145 = vadd.f32 0.0, %v144
    %v146 = vpop.f32.mrb[0].mxu0
    %147 = vdwg.mxu0
    %148 = vst [vmem:[#allocation2] sm:$0xff] %v115
    %149 = vst [vmem:[#allocation2 + $0x8] sm:$0xff] %v120
    %150 = vst [vmem:[#allocation2 + $0x10] sm:$0xff] %v125
    %151 = vst [vmem:[#allocation2 + $0x18] sm:$0xff] %v130
    %152 = vst [vmem:[#allocation2 + $0x20] sm:$0xff] %v135
    %153 = vst [vmem:[#allocation2 + $0x28] sm:$0xff] %v140
    %154 = vst [vmem:[#allocation2 + $0x30] sm:$0xff] %v145
    // Predicated region
    $region10: #{tpu_custom_call.1} parent=1 // pred_check
      _
    $region11: #{tpu_custom_call.1} parent=1 // pred_check_branch
      %156 = sbr.rel (0) target = $region13
    $region12: #{tpu_custom_call.1} parent=1 // pred_region
      %s158 = ssub.s32 896, 896
      %159 = vsyncadd [#allocation3], %s158
      %s160 = sshll.u32 [#allocation2], 4
      %s161 = int_to_ptr.vmem [resolvable:$true] %s160
      %166 = dma.vmem_to_hbm [thread:$0]  %s161, 896, %s2, [#allocation3], 128, 128, 8
    $region13: #{tpu_custom_call.1} parent=1 // pred_fallthru
      _
    // Predicated region
    $region14: #{tpu_custom_call.1} parent=1 // pred_check
      _
    $region15: #{tpu_custom_call.1} parent=1 // pred_check_branch
      %168 = sbr.rel (0) target = $region17
    $region16: #{tpu_custom_call.1} parent=1 // pred_region
      %169 = dma.done [#allocation3], 896
    $region17: #{tpu_custom_call.1} parent=1 // pred_fallthru
      _
    %170 = vsyncpa [#allocation3], 1

</llo_original>
